<compile_context>
chip_gen: v7x
topology: tpu7x:2x2x1
jax: 0.10.0
libtpu: 0.0.40
codegen_flags: <defaults>
</compile_context>

<pallas_src>
import functools

import numpy as np
import jax
import jax.numpy as jnp
from jax.experimental import pallas as pl
from jax.experimental.pallas import tpu as pltpu


def _channel_attention_kernel(x_ref, w1s_ref, w2s_ref, o_ref, *, g, s):
    """One batch-tile.

    x_ref  : (Bt, Cp, L)  packed input, L = g*s, channel c = cp*g + (l // s)
    w1s_ref: (g, Ch, Cp)  fc1 weights split by within-row channel offset j
    w2s_ref: (g, Cp, Ch)  fc2 weights split the same way
    o_ref  : (Bt, Cp, L)  output
    """
    x = x_ref[...].astype(jnp.float32)          # pooled-path math in f32
    bt, cp, lanes = x.shape
    ch = w1s_ref.shape[1]
    neg_inf = float("-inf")

    # ---- adaptive avg / max pool (per logical channel) --------------------
    if g == 1:
        seg = None
        avg_list = [jnp.mean(x, axis=-1, keepdims=True)]           # (Bt,C,1)
        max_list = [jnp.max(x, axis=-1, keepdims=True)]
    else:
        # segmented lane reduction: lane l belongs to channel offset l // s
        seg = jax.lax.broadcasted_iota(jnp.int32, (bt, cp, lanes), 2) // s
        avg_list, max_list = [], []
        inv_s = 1.0 / s
        for j in range(g):
            m = seg == j
            avg_list.append(
                jnp.sum(jnp.where(m, x, 0.0), axis=-1, keepdims=True) * inv_s)
            max_list.append(
                jnp.max(jnp.where(m, x, neg_inf), axis=-1, keepdims=True))

    # pack [avg | max] as two lane columns so both branches share the MLP
    col = jax.lax.broadcasted_iota(jnp.int32, (bt, cp, 2), 2)
    pooled = [jnp.where(col == 0, avg_list[j], max_list[j]) for j in range(g)]

    # ---- fc1 (1x1 conv, no bias) summed over channel offsets, then ReLU ---
    h = None
    for j in range(g):
        w1_j = jnp.broadcast_to(w1s_ref[j][None, :, :], (bt, ch, cp))
        hj = jnp.einsum("bmp,bpk->bmk", w1_j, pooled[j],
                        preferred_element_type=jnp.float32)
        h = hj if h is None else h + hj
    h = jnp.maximum(h, 0.0)                                          # (Bt,Ch,2)

    # ---- fc2, avg_out + max_out, sigmoid -----------------------------------
    att = []
    for j in range(g):
        w2_j = jnp.broadcast_to(w2s_ref[j][None, :, :], (bt, cp, ch))
        a_j = jnp.einsum("bpm,bmk->bpk", w2_j, h,
                         preferred_element_type=jnp.float32)         # (Bt,Cp,2)
        att.append(jax.nn.sigmoid(jnp.sum(a_j, axis=-1, keepdims=True)))

    # ---- broadcast attention over its spatial lanes and rescale x ----------
    if g == 1:
        att_lanes = att[0]                                           # (Bt,C,1)
    else:
        att_lanes = att[0]
        for j in range(1, g):
            att_lanes = jnp.where(seg == j, att[j], att_lanes)       # (Bt,Cp,L)

    o_ref[...] = (x * att_lanes).astype(o_ref.dtype)


class ChannelAttention:
    """Pallas re-implementation of lib/CRNet.py::channel_attention (forward)."""

    def __init__(self, in_planes, ratio=16, *, key):
        # NOTE: the PyTorch module hardcodes `in_planes // 16` regardless of
        # `ratio`; mirror that behaviour exactly.
        del ratio
        hidden = in_planes // 16
        assert hidden >= 1, "channel_attention requires in_planes >= 16"
        self.in_planes = in_planes
        self.hidden = hidden

        k1, k2 = jax.random.split(key)
        # nn.Conv2d default init (kaiming-uniform a=sqrt(5)): bound = 1/sqrt(fan_in)
        b1 = 1.0 / float(np.sqrt(in_planes))
        b2 = 1.0 / float(np.sqrt(hidden))
        # fc1 weight (Ch, C), fc2 weight (C, Ch); 1x1 conv == plain matmul
        self.w1 = jax.random.uniform(k1, (hidden, in_planes), jnp.float32, -b1, b1)
        self.w2 = jax.random.uniform(k2, (in_planes, hidden), jnp.float32, -b2, b2)

    def __call__(self, x):
        N, C, H, W = x.shape
        assert C == self.in_planes
        Ch = self.hidden
        S = H * W

        # Lane-density packing: put g = 128 // S consecutive channels on one
        # 128-lane row when S < 128 (pure reshape, no data movement). Only do
        # it when the packed channel count stays a multiple of 8 (sublanes).
        g = 1
        if S < 128 and 128 % S == 0:
            cand = 128 // S
            if C % cand == 0 and (C // cand) % 8 == 0:
                g = cand
        Cp = C // g
        L = g * S
        x_p = x.reshape(N, Cp, L)

        # Batch tile: target ~2 MB f32 blocks to amortise per-grid-step cost.
        per_batch_bytes = Cp * L * 4
        bt = max(1, min(N, (2 << 20) // per_batch_bytes))
        nb = pl.cdiv(N, bt)
        # v7x has 2 TensorCores: prefer >=2 parallel steps if blocks stay big.
        if N > 1 and nb < 2 and per_batch_bytes * ((N + 1) // 2) >= (512 << 10):
            bt = (N + 1) // 2
            nb = pl.cdiv(N, bt)
        # TODO(synk): when even bt=1 exceeds the VMEM budget (huge C*S), switch
        # to a two-pass spatially tiled pool+rescale variant instead.

        # Split the 1x1-conv weights by within-row channel offset j (c = p*g+j)
        # so the kernel never has to reshape/relayout the packed pooled tensor.
        w1s = self.w1.reshape(Ch, Cp, g).transpose(2, 0, 1)   # (g, Ch, Cp)
        w2s = self.w2.reshape(Cp, g, Ch).transpose(1, 0, 2)   # (g, Cp, Ch)
        weight_bytes = (w1s.size + w2s.size) * 4

        block_f32 = bt * Cp * L * 4
        vmem_limit = int(min(64 << 20,
                             max(32 << 20, 6 * block_f32 + 2 * weight_bytes + (4 << 20))))

        cost = pl.CostEstimate(
            flops=int(N * (3 * C * S + 8 * C * Ch)),
            transcendentals=int(N * C),
            bytes_accessed=int(2 * N * C * S * x.dtype.itemsize + weight_bytes),
        )

        kernel = functools.partial(_channel_attention_kernel, g=g, s=S)
        out_p = pl.pallas_call(
            kernel,
            grid=(nb,),
            in_specs=[
                pl.BlockSpec((bt, Cp, L), lambda b: (b, 0, 0)),
                pl.BlockSpec((g, Ch, Cp), lambda b: (0, 0, 0)),
                pl.BlockSpec((g, Cp, Ch), lambda b: (0, 0, 0)),
            ],
            out_specs=pl.BlockSpec((bt, Cp, L), lambda b: (b, 0, 0)),
            out_shape=jax.ShapeDtypeStruct((N, Cp, L), x.dtype),
            compiler_params=pltpu.CompilerParams(
                dimension_semantics=("parallel",),
                vmem_limit_bytes=vmem_limit),
            cost_estimate=cost,
        )(x_p, w1s, w2s)

        return out_p.reshape(N, C, H, W)

    # pure-JAX reference used only for the correctness check in __main__
    def reference(self, x):
        avg = jnp.mean(x, axis=(2, 3))          # (N, C)
        mx = jnp.max(x, axis=(2, 3))            # (N, C)

        def mlp(p):                              # p: (N, C)
            h = jnp.maximum(p @ self.w1.T, 0.0)  # (N, Ch)
            return h @ self.w2.T                 # (N, C)

        att = jax.nn.sigmoid(mlp(avg) + mlp(mx))
        return x * att[:, :, None, None]


if __name__ == "__main__":
    key = jax.random.PRNGKey(0)
    k_mod1, k_x1, k_mod2, k_x2 = jax.random.split(key, 4)

    # config 1: in_planes=32 (hidden=2), 16x16 spatial (S=256, no packing)
    mod = ChannelAttention(in_planes=32, key=k_mod1)
    x = jax.random.normal(k_x1, (2, 32, 16, 16), jnp.float32)
    out = jax.block_until_ready(mod(x))
    ref = jax.block_until_ready(mod.reference(x))
    assert out.shape == (2, 32, 16, 16)
    assert np.allclose(np.asarray(out), np.asarray(ref), rtol=1e-3, atol=1e-3), \
        "mismatch on in_planes=32 config"

    # config 2: in_planes=64 (hidden=4), 8x8 spatial (S=64 -> g=2 channel packing)
    mod2 = ChannelAttention(in_planes=64, key=k_mod2)
    x2 = jax.random.normal(k_x2, (1, 64, 8, 8), jnp.float32)
    out2 = jax.block_until_ready(mod2(x2))
    ref2 = jax.block_until_ready(mod2.reference(x2))
    assert np.allclose(np.asarray(out2), np.asarray(ref2), rtol=1e-3, atol=1e-3), \
        "mismatch on in_planes=64 config"

    print("KERNEL_OK")
</pallas_src>

<mosaic_0001>
module attributes {stable_mosaic.version = 11 : i64} {
  func.func @_channel_attention_kernel(%arg0: i32, %arg1: memref<2x32x256xf32, #tpu.memory_space<vmem>>, %arg2: memref<1x2x32xf32, #tpu.memory_space<vmem>>, %arg3: memref<1x32x2xf32, #tpu.memory_space<vmem>>, %arg4: memref<2x32x256xf32, #tpu.memory_space<vmem>>) attributes {dimension_semantics = [#tpu.dimension_semantics<parallel>], iteration_bounds = array<i64: 1>, scalar_prefetch = 0 : i64, scratch_operands = 0 : i64, tpu.core_type = #tpu.core_type<tc>, window_params = [{transform_indices = @transform_0, window_bounds = array<i64: 2, 32, 256>}, {pipeline_mode = #tpu.pipeline_mode<synchronous>, transform_indices = @transform_1, window_bounds = array<i64: 1, 2, 32>}, {pipeline_mode = #tpu.pipeline_mode<synchronous>, transform_indices = @transform_2, window_bounds = array<i64: 1, 32, 2>}, {transform_indices = @transform_3, window_bounds = array<i64: 2, 32, 256>}]} {
    %c0 = arith.constant 0 : index
    %c0_0 = arith.constant 0 : index
    %c0_1 = arith.constant 0 : index
    %0 = vector.load %arg1[%c0, %c0_0, %c0_1] : memref<2x32x256xf32, #tpu.memory_space<vmem>>, vector<2x32x256xf32>
    %cst = arith.constant dense<0.000000e+00> : vector<2x32xf32>
    %1 = vector.multi_reduction <add>, %0, %cst [2] : vector<2x32x256xf32> to vector<2x32xf32>
    %2 = vector.shape_cast %1 : vector<2x32xf32> to vector<2x32x1xf32>
    %cst_2 = arith.constant 2.560000e+02 : f32
    %3 = vector.broadcast %cst_2 : f32 to vector<2x32x1xf32>
    %4 = arith.divf %2, %3 : vector<2x32x1xf32>
    %cst_3 = arith.constant dense<0xFF800000> : vector<2x32xf32>
    %5 = vector.multi_reduction <maximumf>, %0, %cst_3 [2] : vector<2x32x256xf32> to vector<2x32xf32>
    %6 = vector.shape_cast %5 : vector<2x32xf32> to vector<2x32x1xf32>
    %7 = tpu.iota {dimensions = array<i32: 2>} : vector<2x32x2xi32>
    %c0_i32 = arith.constant 0 : i32
    %8 = vector.broadcast %c0_i32 : i32 to vector<2x32x2xi32>
    %9 = arith.cmpi eq, %7, %8 : vector<2x32x2xi32>
    %10 = vector.shape_cast %4 : vector<2x32x1xf32> to vector<2x32x1xf32>
    %11 = vector.broadcast %10 : vector<2x32x1xf32> to vector<2x32x2xf32>
    %12 = vector.shape_cast %6 : vector<2x32x1xf32> to vector<2x32x1xf32>
    %13 = vector.broadcast %12 : vector<2x32x1xf32> to vector<2x32x2xf32>
    %14 = arith.select %9, %11, %13 : vector<2x32x2xi1>, vector<2x32x2xf32>
    %c0_4 = arith.constant 0 : index
    %c0_5 = arith.constant 0 : index
    %c0_6 = arith.constant 0 : index
    %15 = vector.load %arg2[%c0_4, %c0_5, %c0_6] : memref<1x2x32xf32, #tpu.memory_space<vmem>>, vector<1x2x32xf32>
    %16 = vector.shape_cast %15 : vector<1x2x32xf32> to vector<2x32xf32>
    %17 = vector.shape_cast %16 : vector<2x32xf32> to vector<1x2x32xf32>
    %18 = vector.shape_cast %17 : vector<1x2x32xf32> to vector<1x2x32xf32>
    %19 = vector.broadcast %18 : vector<1x2x32xf32> to vector<2x2x32xf32>
    "tpu.trace_start"() <{level = 10 : i32, message = "bmp,bpk->bmk"}> : () -> ()
    %cst_7 = arith.constant dense<0.000000e+00> : vector<2x2x2xf32>
    %20 = tpu.matmul %19, %14, %cst_7 {dimension_numbers = #tpu.dot_dimension_numbers<[2], [1], [1], [2], [0, 0, 0, 1, 1, 2], [0], [0]>} : vector<2x2x32xf32>, vector<2x32x2xf32>, vector<2x2x2xf32> -> vector<2x2x2xf32>
    "tpu.trace_stop"() : () -> ()
    %cst_8 = arith.constant 0.000000e+00 : f32
    %21 = vector.broadcast %cst_8 : f32 to vector<2x2x2xf32>
    %22 = arith.maximumf %20, %21 : vector<2x2x2xf32>
    %c0_9 = arith.constant 0 : index
    %c0_10 = arith.constant 0 : index
    %c0_11 = arith.constant 0 : index
    %23 = vector.load %arg3[%c0_9, %c0_10, %c0_11] : memref<1x32x2xf32, #tpu.memory_space<vmem>>, vector<1x32x2xf32>
    %24 = vector.shape_cast %23 : vector<1x32x2xf32> to vector<32x2xf32>
    %25 = vector.shape_cast %24 : vector<32x2xf32> to vector<1x32x2xf32>
    %26 = vector.shape_cast %25 : vector<1x32x2xf32> to vector<1x32x2xf32>
    %27 = vector.broadcast %26 : vector<1x32x2xf32> to vector<2x32x2xf32>
    "tpu.trace_start"() <{level = 10 : i32, message = "bpm,bmk->bpk"}> : () -> ()
    %cst_12 = arith.constant dense<0.000000e+00> : vector<2x32x2xf32>
    %28 = tpu.matmul %27, %22, %cst_12 {dimension_numbers = #tpu.dot_dimension_numbers<[2], [1], [1], [2], [0, 0, 0, 1, 1, 2], [0], [0]>} : vector<2x32x2xf32>, vector<2x2x2xf32>, vector<2x32x2xf32> -> vector<2x32x2xf32>
    "tpu.trace_stop"() : () -> ()
    %cst_13 = arith.constant dense<0.000000e+00> : vector<2x32xf32>
    %29 = vector.multi_reduction <add>, %28, %cst_13 [2] : vector<2x32x2xf32> to vector<2x32xf32>
    %30 = vector.shape_cast %29 : vector<2x32xf32> to vector<2x32x1xf32>
    %31 = arith.negf %30 : vector<2x32x1xf32>
    %32 = math.exp %31 : vector<2x32x1xf32>
    %cst_14 = arith.constant 1.000000e+00 : f32
    %33 = vector.broadcast %cst_14 : f32 to vector<2x32x1xf32>
    %34 = arith.addf %33, %32 : vector<2x32x1xf32>
    %35 = arith.divf %33, %34 : vector<2x32x1xf32>
    %36 = vector.broadcast %35 : vector<2x32x1xf32> to vector<2x32x256xf32>
    %37 = arith.mulf %0, %36 : vector<2x32x256xf32>
    %c0_15 = arith.constant 0 : index
    %c0_16 = arith.constant 0 : index
    %c0_17 = arith.constant 0 : index
    %38 = vector.load %arg4[%c0_15, %c0_16, %c0_17] : memref<2x32x256xf32, #tpu.memory_space<vmem>>, vector<2x32x256xf32>
    tpu.vector_store %arg4[%c0_15, %c0_16, %c0_17], %37 {strides = array<i32>} : memref<2x32x256xf32, #tpu.memory_space<vmem>>, vector<2x32x256xf32>,
    return
  }
  func.func @transform_0(%arg0: i32) -> (i32, i32, i32) {
    %c0_i32 = arith.constant 0 : i32
    %c0_i32_0 = arith.constant 0 : i32
    %c0_i32_1 = arith.constant 0 : i32
    return %arg0, %c0_i32, %c0_i32_0 : i32, i32, i32
  }
  func.func @transform_1(%arg0: i32) -> (i32, i32, i32) {
    %c0_i32 = arith.constant 0 : i32
    %c0_i32_0 = arith.constant 0 : i32
    %c0_i32_1 = arith.constant 0 : i32
    %c0_i32_2 = arith.constant 0 : i32
    return %c0_i32, %c0_i32_0, %c0_i32_1 : i32, i32, i32
  }
  func.func @transform_2(%arg0: i32) -> (i32, i32, i32) {
    %c0_i32 = arith.constant 0 : i32
    %c0_i32_0 = arith.constant 0 : i32
    %c0_i32_1 = arith.constant 0 : i32
    %c0_i32_2 = arith.constant 0 : i32
    return %c0_i32, %c0_i32_0, %c0_i32_1 : i32, i32, i32
  }
  func.func @transform_3(%arg0: i32) -> (i32, i32, i32) {
    %c0_i32 = arith.constant 0 : i32
    %c0_i32_0 = arith.constant 0 : i32
    %c0_i32_1 = arith.constant 0 : i32
    return %arg0, %c0_i32, %c0_i32_0 : i32, i32, i32
  }
}

</mosaic_0001>

<llo_original>
// kernel: tpu_custom_call.1
$region0: #{tpu_custom_call.1}
  #allocation0 [shape = 'u32[]', space=smem, size = 0x4, offset = 0x4, fixed_abs, tag = 'smem constant byte address 0x4 - core index']
  #allocation1 [shape = 'u32[144,128]{1,0:T(1,128)}', space=vmem, size = 0x12000, scoped, tag = 'internal scratch']
  %s0 = inlined_call_operand.hbm [shape: f32[2,32,256], index: 0, kind: input, shape index: {}]
  %s1 = inlined_call_operand.vmem [shape: f32[1,2,32], index: 1, kind: input, shape index: {}]
  %s2 = inlined_call_operand.vmem [shape: f32[1,32,2], index: 2, kind: input, shape index: {}]
  %s3 = inlined_call_operand.hbm [shape: f32[2,32,256], index: 3, kind: output, shape index: {}]
  %s4 = sld [smem:[#allocation0]]
  $region26: #{tpu_custom_call.1} parent=0
    _
  %s6 = ssub.s32 1, %s4
  %s7 = scalar_select 0, %s6, %s4
  $region1: #{tpu_custom_call.1} parent=0
    #allocation2 [shape = 'u8[65536]{0}', space=vmem, size = 0x10000, scoped, tag = 'input window, operand 0, single buffered']
    #allocation3 [shape = 's32[1]{0}', space=sflag, size = 0x4, scoped, tag = 'scoped memory for tpu_custom_call.1']
    #allocation4 [shape = 's32[1]{0}', space=sflag, size = 0x4, scoped, tag = 'scoped memory for tpu_custom_call.1']
    #allocation5 [shape = 'u8[65536]{0}', space=vmem, size = 0x10000, scoped, tag = 'output window, operand 0, single buffered']
    %8 = vsyncpa [#allocation3], 0
    %9 = vsyncpa [#allocation4], 0
    // Predicated region
    $region2: #{tpu_custom_call.1} parent=1 // pred_check
      _
    $region3: #{tpu_custom_call.1} parent=1 // pred_check_branch
      %11 = sbr.rel (0) target = $region5
    $region4: #{tpu_custom_call.1} parent=1 // pred_region
      %s13 = ssub.s32 2048, 2048
      %14 = vsyncadd [#allocation3], %s13
      %s15 = sshll.u32 [#allocation2], 4
      %s16 = int_to_ptr.vmem [resolvable:$true] %s15
      %21 = dma.hbm_to_vmem [thread:$0]  %s0, 2048, %s16, [#allocation3], 256, 256, 16
    $region5: #{tpu_custom_call.1} parent=1 // pred_fallthru
      _
    // Predicated region
    $region6: #{tpu_custom_call.1} parent=1 // pred_check
      _
    $region7: #{tpu_custom_call.1} parent=1 // pred_check_branch
      %23 = sbr.rel (0) target = $region9
    $region8: #{tpu_custom_call.1} parent=1 // pred_region
      _
    $region9: #{tpu_custom_call.1} parent=1 // pred_fallthru
      _
    // Predicated region
    $region10: #{tpu_custom_call.1} parent=1 // pred_check
      _
    $region11: #{tpu_custom_call.1} parent=1 // pred_check_branch
      %25 = sbr.rel (0) target = $region13
    $region12: #{tpu_custom_call.1} parent=1 // pred_region
      _
    $region13: #{tpu_custom_call.1} parent=1 // pred_fallthru
      _
    // Predicated region
    $region14: #{tpu_custom_call.1} parent=1 // pred_check
      _
    $region15: #{tpu_custom_call.1} parent=1 // pred_check_branch
      %27 = sbr.rel (0) target = $region17
    $region16: #{tpu_custom_call.1} parent=1 // pred_region
      %28 = dma.done [#allocation3], 2048
    $region17: #{tpu_custom_call.1} parent=1 // pred_fallthru
      _
    %v29 = vld [vmem:[#allocation2] sm:$0xff]
    %v30 = vld [vmem:[#allocation2 + $0x8] sm:$0xff]
    %v31 = vld [vmem:[#allocation2 + $0x10] sm:$0xff]
    %v32 = vld [vmem:[#allocation2 + $0x18] sm:$0xff]
    %v33 = vld [vmem:[#allocation2 + $0x20] sm:$0xff]
    %v34 = vld [vmem:[#allocation2 + $0x28] sm:$0xff]
    %v35 = vld [vmem:[#allocation2 + $0x30] sm:$0xff]
    %v36 = vld [vmem:[#allocation2 + $0x38] sm:$0xff]
    %v37 = vld [vmem:[#allocation2 + $0x40] sm:$0xff]
    %v38 = vld [vmem:[#allocation2 + $0x48] sm:$0xff]
    %v39 = vld [vmem:[#allocation2 + $0x50] sm:$0xff]
    %v40 = vld [vmem:[#allocation2 + $0x58] sm:$0xff]
    %v41 = vld [vmem:[#allocation2 + $0x60] sm:$0xff]
    %v42 = vld [vmem:[#allocation2 + $0x68] sm:$0xff]
    %v43 = vld [vmem:[#allocation2 + $0x70] sm:$0xff]
    %v44 = vld [vmem:[#allocation2 + $0x78] sm:$0xff]
    %v45 = vadd.f32 %v29, %v30
    %46 = vadd.xlane.f32.xlu0 %v45
    %v47 = vpop.xlane.xlu0 %46
    %v48 = vadd.f32 %v31, %v32
    %49 = vadd.xlane.f32.xlu0 %v48
    %v50 = vpop.xlane.xlu0 %49
    %v51 = vadd.f32 %v33, %v34
    %52 = vadd.xlane.f32.xlu0 %v51
    %v53 = vpop.xlane.xlu0 %52
    %v54 = vadd.f32 %v35, %v36
    %55 = vadd.xlane.f32.xlu0 %v54
    %v56 = vpop.xlane.xlu0 %55
    %v57 = vadd.f32 %v37, %v38
    %58 = vadd.xlane.f32.xlu0 %v57
    %v59 = vpop.xlane.xlu0 %58
    %v60 = vadd.f32 %v39, %v40
    %61 = vadd.xlane.f32.xlu0 %v60
    %v62 = vpop.xlane.xlu0 %61
    %v63 = vadd.f32 %v41, %v42
    %64 = vadd.xlane.f32.xlu0 %v63
    %v65 = vpop.xlane.xlu0 %64
    %v66 = vadd.f32 %v43, %v44
    %67 = vadd.xlane.f32.xlu0 %v66
    %v68 = vpop.xlane.xlu0 %67
    %v69 = vrcp.pop 256.0
    %v70 = vmul.f32 %v47, %v69
    %v71 = vmul.f32 %v50, %v69
    %v72 = vmul.f32 %v53, %v69
    %v73 = vmul.f32 %v56, %v69
    %v74 = vmul.f32 %v59, %v69
    %v75 = vmul.f32 %v62, %v69
    %v76 = vmul.f32 %v65, %v69
    %v77 = vmul.f32 %v68, %v69
    %v78 = vmax.f32 %v29, %v30
    %79 = vmax.xlane.f32.xlu0 %v78
    %v80 = vpop.xlane.xlu0 %79
    %v81 = vmax.f32 %v31, %v32
    %82 = vmax.xlane.f32.xlu0 %v81
    %v83 = vpop.xlane.xlu0 %82
    %v84 = vmax.f32 %v33, %v34
    %85 = vmax.xlane.f32.xlu0 %v84
    %v86 = vpop.xlane.xlu0 %85
    %v87 = vmax.f32 %v35, %v36
    %88 = vmax.xlane.f32.xlu0 %v87
    %v89 = vpop.xlane.xlu0 %88
    %v90 = vmax.f32 %v37, %v38
    %91 = vmax.xlane.f32.xlu0 %v90
    %v92 = vpop.xlane.xlu0 %91
    %v93 = vmax.f32 %v39, %v40
    %94 = vmax.xlane.f32.xlu0 %v93
    %v95 = vpop.xlane.xlu0 %94
    %v96 = vmax.f32 %v41, %v42
    %97 = vmax.xlane.f32.xlu0 %v96
    %v98 = vpop.xlane.xlu0 %97
    %v99 = vmax.f32 %v43, %v44
    %100 = vmax.xlane.f32.xlu0 %v99
    %v101 = vpop.xlane.xlu0 %100
    %v102 = vlaneseq
    %v103 = vand.u32 %v102, 127
    %vm104 = vcmp.eq.s32.totalorder %v103, 0
    %v105 = vsel %vm104, %v70, %v80
    %v106 = vsel %vm104, %v71, %v83
    %v107 = vsel %vm104, %v72, %v86
    %v108 = vsel %vm104, %v73, %v89
    %v109 = vsel %vm104, %v74, %v92
    %v110 = vsel %vm104, %v75, %v95
    %v111 = vsel %vm104, %v76, %v98
    %v112 = vsel %vm104, %v77, %v101
    %v113 = vld [vmem:[%s1] sm:$0x3]
    %vm114 = vcmask 261120
    %v116 = vsel %vm114, %v113, 0
    %118 = vmatprep.subr.mxu0 0.0
    %119 = vmatpush1.msra.mxu0 %v105
    %120 = vmatprep.subr.mxu0 0.0
    %121 = vmatpush1.msra.mxu0 %v106
    %122 = vmatprep.subr.mxu0 0.0
    %123 = vmatpush1.msra.mxu0 %v107
    %124 = vmatprep.subr.mxu0 0.0
    %125 = vmatpush1.msra.mxu0 %v108
    %126 = vmatprep.subr.mxu0 0.0
    %127 = vmatpush1.msra.mxu0 0.0
    %128 = vmatprep.subr.mxu0 0.0
    %129 = vmatpush1.msra.mxu0 0.0
    %130 = vmatprep.subr.mxu0 0.0
    %131 = vmatpush1.msra.mxu0 0.0
    %132 = vmatprep.subr.mxu0 0.0
    %133 = vmatpush1.msra.mxu0 0.0
    %134 = vmatprep.subr.mxu0 0.0
    %135 = vmatpush1.msra.mxu0 0.0
    %136 = vmatprep.subr.mxu0 0.0
    %137 = vmatpush1.msra.mxu0 0.0
    %138 = vmatprep.subr.mxu0 0.0
    %139 = vmatpush1.msra.mxu0 0.0
    %140 = vmatprep.subr.mxu0 0.0
    %141 = vmatpush1.msra.mxu0 0.0
    %142 = vmatprep.subr.mxu0 0.0
    %143 = vmatpush1.msra.mxu0 0.0
    %144 = vmatprep.subr.mxu0 0.0
    %145 = vmatpush1.msra.mxu0 0.0
    %146 = vmatprep.subr.mxu0 0.0
    %147 = vmatpush1.msra.mxu0 0.0
    %148 = vmatprep.subr.mxu0 0.0
    %149 = vmatpush1.msra.mxu0 0.0
    %150 = vmatprep.subr.mxu0 0.0
    %151 = vmatpush1.msra.mxu0 0.0
    %152 = vmatprep.subr.mxu0 0.0
    %153 = vmatpush1.msra.mxu0 0.0
    %154 = vmatprep.subr.mxu0 0.0
    %155 = vmatpush1.msra.mxu0 0.0
    %156 = vmatprep.subr.mxu0 0.0
    %157 = vmatpush1.msra.mxu0 0.0
    %158 = vmatprep.subr.mxu0 0.0
    %159 = vmatpush1.msra.mxu0 0.0
    %160 = vmatprep.subr.mxu0 0.0
    %161 = vmatpush1.msra.mxu0 0.0
    %162 = vmatprep.subr.mxu0 0.0
    %163 = vmatpush1.msra.mxu0 0.0
    %164 = vmatprep.subr.mxu0 0.0
    %165 = vmatpush1.msra.mxu0 0.0
    %166 = vmatprep.subr.mxu0 0.0
    %167 = vmatpush1.msra.mxu0 0.0
    %168 = vmatprep.subr.mxu0 0.0
    %169 = vmatpush1.msra.mxu0 0.0
    %170 = vmatprep.subr.mxu0 0.0
    %171 = vmatpush1.msra.mxu0 0.0
    %172 = vmatprep.subr.mxu0 0.0
    %173 = vmatpush1.msra.mxu0 0.0
    %174 = vmatprep.subr.mxu0 0.0
    %175 = vmatpush1.msra.mxu0 0.0
    %176 = vmatprep.subr.mxu0 0.0
    %177 = vmatpush1.msra.mxu0 0.0
    %178 = vmatprep.subr.mxu0 0.0
    %179 = vmatpush1.msra.mxu0 0.0
    %180 = vmatprep.subr.mxu0 0.0
    %181 = vmatpush1.msra.mxu0 0.0
    %182 = vmatprep.mubr.f32.mxu0 0.0
    %183 = vmatmul.mubr.f32.gmra.mrb[0].mxu0 %v116
    %v184 = vpop.f32.mrb[0].mxu0
    %v185 = vadd.f32 0.0, %v184
    %v186 = vpop.f32.mrb[0].mxu0
    %187 = vdwg.mxu0
    %188 = vmatprep.subr.mxu0 0.0
    %189 = vmatpush1.msra.mxu0 %v109
    %190 = vmatprep.subr.mxu0 0.0
    %191 = vmatpush1.msra.mxu0 %v110
    %192 = vmatprep.subr.mxu0 0.0
    %193 = vmatpush1.msra.mxu0 %v111
    %194 = vmatprep.subr.mxu0 0.0
    %195 = vmatpush1.msra.mxu0 %v112
    %196 = vmatprep.subr.mxu0 0.0
    %197 = vmatpush1.msra.mxu0 0.0
    %198 = vmatprep.subr.mxu0 0.0
    %199 = vmatpush1.msra.mxu0 0.0
    %200 = vmatprep.subr.mxu0 0.0
    %201 = vmatpush1.msra.mxu0 0.0
    %202 = vmatprep.subr.mxu0 0.0
    %203 = vmatpush1.msra.mxu0 0.0
    %204 = vmatprep.subr.mxu0 0.0
    %205 = vmatpush1.msra.mxu0 0.0
    %206 = vmatprep.subr.mxu0 0.0
    %207 = vmatpush1.msra.mxu0 0.0
    %208 = vmatprep.subr.mxu0 0.0
    %209 = vmatpush1.msra.mxu0 0.0
    %210 = vmatprep.subr.mxu0 0.0
    %211 = vmatpush1.msra.mxu0 0.0
    %212 = vmatprep.subr.mxu0 0.0
    %213 = vmatpush1.msra.mxu0 0.0
    %214 = vmatprep.subr.mxu0 0.0
    %215 = vmatpush1.msra.mxu0 0.0
    %216 = vmatprep.subr.mxu0 0.0
    %217 = vmatpush1.msra.mxu0 0.0
    %218 = vmatprep.subr.mxu0 0.0
    %219 = vmatpush1.msra.mxu0 0.0
    %220 = vmatprep.subr.mxu0 0.0
    %221 = vmatpush1.msra.mxu0 0.0
    %222 = vmatprep.subr.mxu0 0.0
    %223 = vmatpush1.msra.mxu0 0.0
    %224 = vmatprep.subr.mxu0 0.0
    %225 = vmatpush1.msra.mxu0 0.0
    %226 = vmatprep.subr.mxu0 0.0
    %227 = vmatpush1.msra.mxu0 0.0
    %228 = vmatprep.subr.mxu0 0.0
    %229 = vmatpush1.msra.mxu0 0.0
    %230 = vmatprep.subr.mxu0 0.0
    %231 = vmatpush1.msra.mxu0 0.0
    %232 = vmatprep.subr.mxu0 0.0
    %233 = vmatpush1.msra.mxu0 0.0
    %234 = vmatprep.subr.mxu0 0.0
    %235 = vmatpush1.msra.mxu0 0.0
    %236 = vmatprep.subr.mxu0 0.0
    %237 = vmatpush1.msra.mxu0 0.0
    %238 = vmatprep.subr.mxu0 0.0
    %239 = vmatpush1.msra.mxu0 0.0
    %240 = vmatprep.subr.mxu0 0.0
    %241 = vmatpush1.msra.mxu0 0.0
    %242 = vmatprep.subr.mxu0 0.0
    %243 = vmatpush1.msra.mxu0 0.0
    %244 = vmatprep.subr.mxu0 0.0
    %245 = vmatpush1.msra.mxu0 0.0
    %246 = vmatprep.subr.mxu0 0.0
    %247 = vmatpush1.msra.mxu0 0.0
    %248 = vmatprep.subr.mxu0 0.0
    %249 = vmatpush1.msra.mxu0 0.0
    %250 = vmatprep.subr.mxu0 0.0
    %251 = vmatpush1.msra.mxu0 0.0
    %252 = vmatprep.mubr.f32.mxu0 0.0
    %253 = vmatmul.mubr.f32.gmra.mrb[0].mxu0 %v116
    %v254 = vpop.f32.mrb[0].mxu0
    %v255 = vadd.f32 0.0, %v254
    %v256 = vpop.f32.mrb[0].mxu0
    %257 = vdwg.mxu0
    %v258 = vmax.f32 %v185, 0.0
    %v259 = vmax.f32 %v255, 0.0
    %v260 = vld [vmem:[%s2] sm:$0xff]
    %v261 = vld [vmem:[%s2 + $0x8] sm:$0xff]
    %v262 = vld [vmem:[%s2 + $0x10] sm:$0xff]
    %v263 = vld [vmem:[%s2 + $0x18] sm:$0xff]
    %vm264 = vcmask 15360
    %v266 = vsel %vm264, %v260, 0
    %v269 = vsel %vm264, %v261, 0
    %v272 = vsel %vm264, %v262, 0
    %v275 = vsel %vm264, %v263, 0
    %vm277 = vcmask 1041408
    %v279 = vsel %vm277, %v258, 0
    %281 = vmatprep.subr.mxu0 0.0
    %282 = vmatpush1.msra.mxu0 %v279
    %283 = vmatprep.subr.mxu0 0.0
    %284 = vmatpush1.msra.mxu0 0.0
    %285 = vmatprep.subr.mxu0 0.0
    %286 = vmatpush1.msra.mxu0 0.0
    %287 = vmatprep.subr.mxu0 0.0
    %288 = vmatpush1.msra.mxu0 0.0
    %289 = vmatprep.subr.mxu0 0.0
    %290 = vmatpush1.msra.mxu0 0.0
    %291 = vmatprep.subr.mxu0 0.0
    %292 = vmatpush1.msra.mxu0 0.0
    %293 = vmatprep.subr.mxu0 0.0
    %294 = vmatpush1.msra.mxu0 0.0
    %295 = vmatprep.subr.mxu0 0.0
    %296 = vmatpush1.msra.mxu0 0.0
    %297 = vmatprep.subr.mxu0 0.0
    %298 = vmatpush1.msra.mxu0 0.0
    %299 = vmatprep.subr.mxu0 0.0
    %300 = vmatpush1.msra.mxu0 0.0
    %301 = vmatprep.subr.mxu0 0.0
    %302 = vmatpush1.msra.mxu0 0.0
    %303 = vmatprep.subr.mxu0 0.0
    %304 = vmatpush1.msra.mxu0 0.0
    %305 = vmatprep.subr.mxu0 0.0
    %306 = vmatpush1.msra.mxu0 0.0
    %307 = vmatprep.subr.mxu0 0.0
    %308 = vmatpush1.msra.mxu0 0.0
    %309 = vmatprep.subr.mxu0 0.0
    %310 = vmatpush1.msra.mxu0 0.0
    %311 = vmatprep.subr.mxu0 0.0
    %312 = vmatpush1.msra.mxu0 0.0
    %313 = vmatprep.subr.mxu0 0.0
    %314 = vmatpush1.msra.mxu0 0.0
    %315 = vmatprep.subr.mxu0 0.0
    %316 = vmatpush1.msra.mxu0 0.0
    %317 = vmatprep.subr.mxu0 0.0
    %318 = vmatpush1.msra.mxu0 0.0
    %319 = vmatprep.subr.mxu0 0.0
    %320 = vmatpush1.msra.mxu0 0.0
    %321 = vmatprep.subr.mxu0 0.0
    %322 = vmatpush1.msra.mxu0 0.0
    %323 = vmatprep.subr.mxu0 0.0
    %324 = vmatpush1.msra.mxu0 0.0
    %325 = vmatprep.subr.mxu0 0.0
    %326 = vmatpush1.msra.mxu0 0.0
    %327 = vmatprep.subr.mxu0 0.0
    %328 = vmatpush1.msra.mxu0 0.0
    %329 = vmatprep.subr.mxu0 0.0
    %330 = vmatpush1.msra.mxu0 0.0
    %331 = vmatprep.subr.mxu0 0.0
    %332 = vmatpush1.msra.mxu0 0.0
    %333 = vmatprep.subr.mxu0 0.0
    %334 = vmatpush1.msra.mxu0 0.0
    %335 = vmatprep.subr.mxu0 0.0
    %336 = vmatpush1.msra.mxu0 0.0
    %337 = vmatprep.subr.mxu0 0.0
    %338 = vmatpush1.msra.mxu0 0.0
    %339 = vmatprep.subr.mxu0 0.0
    %340 = vmatpush1.msra.mxu0 0.0
    %341 = vmatprep.subr.mxu0 0.0
    %342 = vmatpush1.msra.mxu0 0.0
    %343 = vmatprep.subr.mxu0 0.0
    %344 = vmatpush1.msra.mxu0 0.0
    %345 = vmatprep.mubr.f32.mxu0 0.0
    %346 = vmatmul.mubr.f32.gmra.mrb[0].mxu0 %v266
    %v347 = vpop.f32.mrb[0].mxu0
    %v348 = vadd.f32 0.0, %v347
    %v349 = vpop.f32.mrb[0].mxu0
    %350 = vmatprep.mubr.f32.mxu0 0.0
    %351 = vmatmul.mubr.f32.gmra.mrb[0].mxu0 %v269
    %v352 = vpop.f32.mrb[0].mxu0
    %v353 = vadd.f32 0.0, %v352
    %v354 = vpop.f32.mrb[0].mxu0
    %355 = vmatprep.mubr.f32.mxu0 0.0
    %356 = vmatmul.mubr.f32.gmra.mrb[0].mxu0 %v272
    %v357 = vpop.f32.mrb[0].mxu0
    %v358 = vadd.f32 0.0, %v357
    %v359 = vpop.f32.mrb[0].mxu0
    %360 = vmatprep.mubr.f32.mxu0 0.0
    %361 = vmatmul.mubr.f32.gmra.mrb[0].mxu0 %v275
    %v362 = vpop.f32.mrb[0].mxu0
    %v363 = vadd.f32 0.0, %v362
    %v364 = vpop.f32.mrb[0].mxu0
    %365 = vdwg.mxu0
    %v367 = vsel %vm277, %v259, 0
    %369 = vmatprep.subr.mxu0 0.0
    %370 = vmatpush1.msra.mxu0 %v367
    %371 = vmatprep.subr.mxu0 0.0
    %372 = vmatpush1.msra.mxu0 0.0
    %373 = vmatprep.subr.mxu0 0.0
    %374 = vmatpush1.msra.mxu0 0.0
    %375 = vmatprep.subr.mxu0 0.0
    %376 = vmatpush1.msra.mxu0 0.0
    %377 = vmatprep.subr.mxu0 0.0
    %378 = vmatpush1.msra.mxu0 0.0
    %379 = vmatprep.subr.mxu0 0.0
    %380 = vmatpush1.msra.mxu0 0.0
    %381 = vmatprep.subr.mxu0 0.0
    %382 = vmatpush1.msra.mxu0 0.0
    %383 = vmatprep.subr.mxu0 0.0
    %384 = vmatpush1.msra.mxu0 0.0
    %385 = vmatprep.subr.mxu0 0.0
    %386 = vmatpush1.msra.mxu0 0.0
    %387 = vmatprep.subr.mxu0 0.0
    %388 = vmatpush1.msra.mxu0 0.0
    %389 = vmatprep.subr.mxu0 0.0
    %390 = vmatpush1.msra.mxu0 0.0
    %391 = vmatprep.subr.mxu0 0.0
    %392 = vmatpush1.msra.mxu0 0.0
    %393 = vmatprep.subr.mxu0 0.0
    %394 = vmatpush1.msra.mxu0 0.0
    %395 = vmatprep.subr.mxu0 0.0
    %396 = vmatpush1.msra.mxu0 0.0
    %397 = vmatprep.subr.mxu0 0.0
    %398 = vmatpush1.msra.mxu0 0.0
    %399 = vmatprep.subr.mxu0 0.0
    %400 = vmatpush1.msra.mxu0 0.0
    %401 = vmatprep.subr.mxu0 0.0
    %402 = vmatpush1.msra.mxu0 0.0
    %403 = vmatprep.subr.mxu0 0.0
    %404 = vmatpush1.msra.mxu0 0.0
    %405 = vmatprep.subr.mxu0 0.0
    %406 = vmatpush1.msra.mxu0 0.0
    %407 = vmatprep.subr.mxu0 0.0
    %408 = vmatpush1.msra.mxu0 0.0
    %409 = vmatprep.subr.mxu0 0.0
    %410 = vmatpush1.msra.mxu0 0.0
    %411 = vmatprep.subr.mxu0 0.0
    %412 = vmatpush1.msra.mxu0 0.0
    %413 = vmatprep.subr.mxu0 0.0
    %414 = vmatpush1.msra.mxu0 0.0
    %415 = vmatprep.subr.mxu0 0.0
    %416 = vmatpush1.msra.mxu0 0.0
    %417 = vmatprep.subr.mxu0 0.0
    %418 = vmatpush1.msra.mxu0 0.0
    %419 = vmatprep.subr.mxu0 0.0
    %420 = vmatpush1.msra.mxu0 0.0
    %421 = vmatprep.subr.mxu0 0.0
    %422 = vmatpush1.msra.mxu0 0.0
    %423 = vmatprep.subr.mxu0 0.0
    %424 = vmatpush1.msra.mxu0 0.0
    %425 = vmatprep.subr.mxu0 0.0
    %426 = vmatpush1.msra.mxu0 0.0
    %427 = vmatprep.subr.mxu0 0.0
    %428 = vmatpush1.msra.mxu0 0.0
    %429 = vmatprep.subr.mxu0 0.0
    %430 = vmatpush1.msra.mxu0 0.0
    %431 = vmatprep.subr.mxu0 0.0
    %432 = vmatpush1.msra.mxu0 0.0
    %433 = vmatprep.mubr.f32.mxu0 0.0
    %434 = vmatmul.mubr.f32.gmra.mrb[0].mxu0 %v266
    %v435 = vpop.f32.mrb[0].mxu0
    %v436 = vadd.f32 0.0, %v435
    %v437 = vpop.f32.mrb[0].mxu0
    %438 = vmatprep.mubr.f32.mxu0 0.0
    %439 = vmatmul.mubr.f32.gmra.mrb[0].mxu0 %v269
    %v440 = vpop.f32.mrb[0].mxu0
    %v441 = vadd.f32 0.0, %v440
    %v442 = vpop.f32.mrb[0].mxu0
    %443 = vmatprep.mubr.f32.mxu0 0.0
    %444 = vmatmul.mubr.f32.gmra.mrb[0].mxu0 %v272
    %v445 = vpop.f32.mrb[0].mxu0
    %v446 = vadd.f32 0.0, %v445
    %v447 = vpop.f32.mrb[0].mxu0
    %448 = vmatprep.mubr.f32.mxu0 0.0
    %449 = vmatmul.mubr.f32.gmra.mrb[0].mxu0 %v275
    %v450 = vpop.f32.mrb[0].mxu0
    %v451 = vadd.f32 0.0, %v450
    %v452 = vpop.f32.mrb[0].mxu0
    %453 = vdwg.mxu0
    %v454 = vsel %vm264, %v348, 0.0
    %455 = vadd.xlane.f32.xlu0 %v454
    %v456 = vpop.xlane.xlu0 %455
    %v457 = vsel %vm264, %v353, 0.0
    %458 = vadd.xlane.f32.xlu0 %v457
    %v459 = vpop.xlane.xlu0 %458
    %v460 = vsel %vm264, %v358, 0.0
    %461 = vadd.xlane.f32.xlu0 %v460
    %v462 = vpop.xlane.xlu0 %461
    %v463 = vsel %vm264, %v363, 0.0
    %464 = vadd.xlane.f32.xlu0 %v463
    %v465 = vpop.xlane.xlu0 %464
    %v466 = vsel %vm264, %v436, 0.0
    %467 = vadd.xlane.f32.xlu0 %v466
    %v468 = vpop.xlane.xlu0 %467
    %v469 = vsel %vm264, %v441, 0.0
    %470 = vadd.xlane.f32.xlu0 %v469
    %v471 = vpop.xlane.xlu0 %470
    %v472 = vsel %vm264, %v446, 0.0
    %473 = vadd.xlane.f32.xlu0 %v472
    %v474 = vpop.xlane.xlu0 %473
    %v475 = vsel %vm264, %v451, 0.0
    %476 = vadd.xlane.f32.xlu0 %v475
    %v477 = vpop.xlane.xlu0 %476
    %v478 = vxor.u32 %v456, 2147483648
    %v479 = vxor.u32 %v459, 2147483648
    %v480 = vxor.u32 %v462, 2147483648
    %v481 = vxor.u32 %v465, 2147483648
    %v482 = vxor.u32 %v468, 2147483648
    %v483 = vxor.u32 %v471, 2147483648
    %v484 = vxor.u32 %v474, 2147483648
    %v485 = vxor.u32 %v477, 2147483648
    %v486 = vmul.f32 %v478, 1.442695
    %v487 = vpow.pop %v486
    %v488 = vmul.f32 %v479, 1.442695
    %v489 = vpow.pop %v488
    %v490 = vmul.f32 %v480, 1.442695
    %v491 = vpow.pop %v490
    %v492 = vmul.f32 %v481, 1.442695
    %v493 = vpow.pop %v492
    %v494 = vmul.f32 %v482, 1.442695
    %v495 = vpow.pop %v494
    %v496 = vmul.f32 %v483, 1.442695
    %v497 = vpow.pop %v496
    %v498 = vmul.f32 %v484, 1.442695
    %v499 = vpow.pop %v498
    %v500 = vmul.f32 %v485, 1.442695
    %v501 = vpow.pop %v500
    %v502 = vadd.f32 %v487, 1.0
    %v503 = vadd.f32 %v489, 1.0
    %v504 = vadd.f32 %v491, 1.0
    %v505 = vadd.f32 %v493, 1.0
    %v506 = vadd.f32 %v495, 1.0
    %v507 = vadd.f32 %v497, 1.0
    %v508 = vadd.f32 %v499, 1.0
    %v509 = vadd.f32 %v501, 1.0
    %v510 = vrcp.pop %v502
    %v511 = vmul.f32 1.0, %v510
    %v512 = vrcp.pop %v503
    %v513 = vmul.f32 1.0, %v512
    %v514 = vrcp.pop %v504
    %v515 = vmul.f32 1.0, %v514
    %v516 = vrcp.pop %v505
    %v517 = vmul.f32 1.0, %v516
    %v518 = vrcp.pop %v506
    %v519 = vmul.f32 1.0, %v518
    %v520 = vrcp.pop %v507
    %v521 = vmul.f32 1.0, %v520
    %v522 = vrcp.pop %v508
    %v523 = vmul.f32 1.0, %v522
    %v524 = vrcp.pop %v509
    %v525 = vmul.f32 1.0, %v524
    %v526 = vmul.f32 %v29, %v511
    %v527 = vmul.f32 %v30, %v511
    %v528 = vmul.f32 %v31, %v513
    %v529 = vmul.f32 %v32, %v513
    %v530 = vmul.f32 %v33, %v515
    %v531 = vmul.f32 %v34, %v515
    %v532 = vmul.f32 %v35, %v517
    %v533 = vmul.f32 %v36, %v517
    %v534 = vmul.f32 %v37, %v519
    %v535 = vmul.f32 %v38, %v519
    %v536 = vmul.f32 %v39, %v521
    %v537 = vmul.f32 %v40, %v521
    %v538 = vmul.f32 %v41, %v523
    %v539 = vmul.f32 %v42, %v523
    %v540 = vmul.f32 %v43, %v525
    %v541 = vmul.f32 %v44, %v525
    %542 = vst [vmem:[#allocation5] sm:$0xff] %v526
    %543 = vst [vmem:[#allocation5 + $0x8] sm:$0xff] %v527
    %544 = vst [vmem:[#allocation5 + $0x10] sm:$0xff] %v528
    %545 = vst [vmem:[#allocation5 + $0x18] sm:$0xff] %v529
    %546 = vst [vmem:[#allocation5 + $0x20] sm:$0xff] %v530
    %547 = vst [vmem:[#allocation5 + $0x28] sm:$0xff] %v531
    %548 = vst [vmem:[#allocation5 + $0x30] sm:$0xff] %v532
    %549 = vst [vmem:[#allocation5 + $0x38] sm:$0xff] %v533
    %550 = vst [vmem:[#allocation5 + $0x40] sm:$0xff] %v534
    %551 = vst [vmem:[#allocation5 + $0x48] sm:$0xff] %v535
    %552 = vst [vmem:[#allocation5 + $0x50] sm:$0xff] %v536
    %553 = vst [vmem:[#allocation5 + $0x58] sm:$0xff] %v537
    %554 = vst [vmem:[#allocation5 + $0x60] sm:$0xff] %v538
    %555 = vst [vmem:[#allocation5 + $0x68] sm:$0xff] %v539
    %556 = vst [vmem:[#allocation5 + $0x70] sm:$0xff] %v540
    %557 = vst [vmem:[#allocation5 + $0x78] sm:$0xff] %v541
    // Predicated region
    $region18: #{tpu_custom_call.1} parent=1 // pred_check
      _
    $region19: #{tpu_custom_call.1} parent=1 // pred_check_branch
      %559 = sbr.rel (0) target = $region21
    $region20: #{tpu_custom_call.1} parent=1 // pred_region
      %s561 = ssub.s32 2048, 2048
      %562 = vsyncadd [#allocation4], %s561
      %s563 = sshll.u32 [#allocation5], 4
      %s564 = int_to_ptr.vmem [resolvable:$true] %s563
      %569 = dma.vmem_to_hbm [thread:$0]  %s564, 2048, %s3, [#allocation4], 256, 256, 16
    $region21: #{tpu_custom_call.1} parent=1 // pred_fallthru
      _
    // Predicated region
    $region22: #{tpu_custom_call.1} parent=1 // pred_check
      _
    $region23: #{tpu_custom_call.1} parent=1 // pred_check_branch
      %571 = sbr.rel (0) target = $region25
    $region24: #{tpu_custom_call.1} parent=1 // pred_region
      %572 = dma.done [#allocation4], 2048
    $region25: #{tpu_custom_call.1} parent=1 // pred_fallthru
      _
    %573 = vsyncpa [#allocation3], 1
    %574 = vsyncpa [#allocation4], 1

</llo_original>
